<compile_context>
chip_gen: v7x
topology: tpu7x:2x2x1
jax: 0.10.0
libtpu: 0.0.40
codegen_flags: <defaults>
</compile_context>

<pallas_src>
import math

import jax
import jax.numpy as jnp
from jax import lax
from jax.experimental import pallas as pl
from jax.experimental.pallas import tpu as pltpu


def attention_fusion_kernel(x_ref, y_ref,
                            wq_ref, bq_ref,
                            wkv_ref, bkv_ref,
                            o_ref,
                            kv_ref):
    # x_ref / o_ref blocks: (1, tq, Cp); y_ref block: (1, S, Cp) bf16.
    # wq: (Cp, Cp) bf16 (pre-scaled by 1/sqrt(C)); wkv: (Cp, 2Cp) bf16.
    # bq: (1, Cp) f32; bkv: (1, 2Cp) f32. kv_ref scratch: (S, 2Cp) bf16.
    Cp = x_ref.shape[-1]

    # Per-batch K/V projection cache: only recompute when the query-tile index
    # wraps to 0 (i.e. at the start of each batch). One fused matmul produces
    # both K and V.
    @pl.when(pl.program_id(1) == 0)
    def _():
        kv = jnp.dot(y_ref[0], wkv_ref[...],
                     preferred_element_type=jnp.float32) + bkv_ref[0]
        kv_ref[...] = kv.astype(jnp.bfloat16)

    x = x_ref[0]                                   # (tq, Cp) f32, kept for residual

    # Query projection on the MXU: bf16 inputs, f32 accumulation. The 1/sqrt(C)
    # score scale was folded into wq/bq on the host.
    q = jnp.dot(x.astype(jnp.bfloat16), wq_ref[...],
                preferred_element_type=jnp.float32) + bq_ref[0]

    k = kv_ref[:, :Cp]                             # (S, Cp) bf16
    v = kv_ref[:, Cp:]                             # (S, Cp) bf16

    # scores[i, j] = q[i, :] . k[j, :] -- contract on both last dims so Mosaic
    # feeds the MXU directly; no explicit k.T through the XLU.
    scores = lax.dot_general(
        q.astype(jnp.bfloat16), k,
        dimension_numbers=(((1,), (1,)), ((), ())),
        preferred_element_type=jnp.float32)        # (tq, S)

    # Numerically stable softmax in f32; normalization is deferred until after
    # the PV matmul (C-wide multiply instead of S-wide, one fewer (tq, S)
    # temporary). Reciprocal goes to the otherwise-idle EUP slot.
    m = jnp.max(scores, axis=-1, keepdims=True)
    e = jnp.exp(scores - m)
    denom = jnp.sum(e, axis=-1, keepdims=True)

    attended = jnp.dot(e.astype(jnp.bfloat16), v,
                       preferred_element_type=jnp.float32)   # (tq, Cp)
    attended = attended * pl.reciprocal(denom, approx=True)

    o_ref[0] = (x + attended).astype(o_ref.dtype)


def _vmem_budget_and_cap():
    """(scoped VMEM limit to request, max query tile) derived from the chip."""
    try:
        cap = pltpu.get_tpu_info().vmem_capacity_bytes
    except Exception:
        cap = 64 * 1024 * 1024                      # conservative (v7x-sized)
    budget = int(cap * 0.75)                        # headroom for internal scratch
    max_tq = 256 if cap <= 64 * 1024 * 1024 else 512
    return budget, max_tq


def _pick_q_tile(S, Cp, budget_bytes, max_tq):
    """Largest power-of-two tq <= max_tq dividing S whose VMEM footprint fits."""
    # Fixed residents: KV scratch (S, 2Cp) bf16, KV input block (S, Cp) bf16
    # (counted double-buffered), weights wq (Cp,Cp) + wkv (Cp,2Cp) bf16.
    fixed = (S * 2 * Cp * 2) + (2 * S * Cp * 2) + (Cp * Cp + Cp * 2 * Cp) * 2
    tq = max_tq
    while tq >= 8:
        if S % tq == 0:
            per_step = 2 * (2 * tq * Cp * 4)        # x/out f32 blocks, double-buffered
            temps = 3 * tq * S * 4                  # scores/exp/etc f32 temporaries
            if fixed + per_step + temps <= budget_bytes:
                return tq
        tq //= 2
    return S


def attention_fusion(enc_out, enc_out_sgn, params):
    """enc_out, enc_out_sgn: (B, S, C) float32. params: PyTorch-layout weights."""
    B, S, C = enc_out.shape
    inv_scale = 1.0 / math.sqrt(C)

    # Pad the channel dim to a lane-dense multiple of 128. Padded weight rows/
    # columns and bias entries are zero, so padded lanes of q/k/v are zero and
    # contribute nothing; the output is sliced back to C at the end.
    Cp = max(128, ((C + 127) // 128) * 128)
    pc = Cp - C

    # nn.Linear weights are (out, in); pre-transpose so the kernel does x @ W.
    wq_t = jnp.pad(params["wq"].T * inv_scale, ((0, pc), (0, pc))).astype(jnp.bfloat16)
    bq = jnp.pad(params["bq"] * inv_scale, (0, pc)).reshape(1, Cp).astype(jnp.float32)

    wk_t = jnp.pad(params["wk"].T, ((0, pc), (0, pc)))
    wv_t = jnp.pad(params["wv"].T, ((0, pc), (0, pc)))
    wkv = jnp.concatenate([wk_t, wv_t], axis=1).astype(jnp.bfloat16)     # (Cp, 2Cp)
    bkv = jnp.concatenate([jnp.pad(params["bk"], (0, pc)),
                           jnp.pad(params["bv"], (0, pc))]
                          ).reshape(1, 2 * Cp).astype(jnp.float32)

    x_p = jnp.pad(enc_out, ((0, 0), (0, 0), (0, pc)))                    # f32
    y_p = jnp.pad(enc_out_sgn, ((0, 0), (0, 0), (0, pc))).astype(jnp.bfloat16)

    vmem_budget, max_tq = _vmem_budget_and_cap()
    tq = _pick_q_tile(S, Cp, vmem_budget, max_tq)
    n_q_tiles = S // tq

    # TODO(synk): for very large S where the full-sequence KV cache plus the
    # (tq, S) temporaries exceed the VMEM budget, switch to an inner KV-tile
    # loop with an online (flash-style) softmax instead of full-S residency.

    q_spec = pl.BlockSpec((1, tq, Cp), lambda b, qi: (b, qi, 0))
    # KV block index only changes with the batch axis -> single buffering when
    # it is large (saves the biggest VMEM allocation on the 64 MiB part).
    if S * Cp * 2 > 4 * 1024 * 1024:
        kv_spec = pl.BlockSpec((1, S, Cp), lambda b, qi: (b, 0, 0),
                               pipeline_mode=pl.Buffered(1))
    else:
        kv_spec = pl.BlockSpec((1, S, Cp), lambda b, qi: (b, 0, 0))
    wq_spec = pl.BlockSpec((Cp, Cp), lambda b, qi: (0, 0))
    bq_spec = pl.BlockSpec((1, Cp), lambda b, qi: (0, 0))
    wkv_spec = pl.BlockSpec((Cp, 2 * Cp), lambda b, qi: (0, 0))
    bkv_spec = pl.BlockSpec((1, 2 * Cp), lambda b, qi: (0, 0))

    out_p = pl.pallas_call(
        attention_fusion_kernel,
        out_shape=jax.ShapeDtypeStruct((B, S, Cp), enc_out.dtype),
        grid_spec=pltpu.PrefetchScalarGridSpec(
            num_scalar_prefetch=0,
            grid=(B, n_q_tiles),
            in_specs=[q_spec, kv_spec,
                      wq_spec, bq_spec,
                      wkv_spec, bkv_spec],
            out_specs=q_spec,
            scratch_shapes=[pltpu.VMEM((S, 2 * Cp), jnp.bfloat16)],
        ),
        compiler_params=pltpu.CompilerParams(
            # Batch axis is megacore-sharded; query-tile axis must be
            # "arbitrary" because the per-batch KV cache is carried across it.
            dimension_semantics=("parallel", "arbitrary"),
            vmem_limit_bytes=vmem_budget),
    )(x_p, y_p, wq_t, bq, wkv, bkv)

    return out_p[..., :C]


def make_params(key, in_channels):
    """Deterministic parameter init mimicking nn.Linear shapes (out, in)."""
    ks = jax.random.split(key, 6)
    bound = 1.0 / jnp.sqrt(jnp.float32(in_channels))
    def u(k, shape):
        return jax.random.uniform(k, shape, jnp.float32, -bound, bound)
    return {
        "wq": u(ks[0], (in_channels, in_channels)), "bq": u(ks[1], (in_channels,)),
        "wk": u(ks[2], (in_channels, in_channels)), "bk": u(ks[3], (in_channels,)),
        "wv": u(ks[4], (in_channels, in_channels)), "bv": u(ks[5], (in_channels,)),
    }


def reference(enc_out, enc_out_sgn, params):
    """Pure-JAX f32 reference of the PyTorch forward for verification."""
    C = enc_out.shape[-1]
    q = enc_out @ params["wq"].T + params["bq"]
    k = enc_out_sgn @ params["wk"].T + params["bk"]
    v = enc_out_sgn @ params["wv"].T + params["bv"]
    scores = jnp.einsum("bqc,bkc->bqk", q, k) / jnp.sqrt(jnp.float32(C))
    w = jax.nn.softmax(scores, axis=-1)
    return enc_out + jnp.einsum("bqk,bkc->bqc", w, v)


if __name__ == "__main__":
    key = jax.random.PRNGKey(0)
    k_x, k_y, k_p = jax.random.split(key, 3)

    B, S, C = 2, 8, 32
    enc_out = jax.random.normal(k_x, (B, S, C), jnp.float32)
    enc_out_sgn = jax.random.normal(k_y, (B, S, C), jnp.float32)
    params = make_params(k_p, C)

    out = attention_fusion(enc_out, enc_out_sgn, params)
    out = jax.block_until_ready(out)

    ref = reference(enc_out, enc_out_sgn, params)
    assert out.shape == (B, S, C)
    # bf16 MXU inputs (x, y, exp-weights) + approx EUP reciprocal -> loosened tol.
    assert jnp.allclose(out, ref, atol=5e-2, rtol=5e-2), "mismatch vs reference"

    print("KERNEL_OK")
</pallas_src>

<mosaic_0001>
module attributes {stable_mosaic.version = 11 : i64} {
  func.func @attention_fusion_kernel(%arg0: i32, %arg1: i32, %arg2: memref<1x8x128xf32, #tpu.memory_space<vmem>>, %arg3: memref<1x8x128xbf16, #tpu.memory_space<vmem>>, %arg4: memref<128x128xbf16, #tpu.memory_space<vmem>>, %arg5: memref<1x128xf32, #tpu.memory_space<vmem>>, %arg6: memref<128x256xbf16, #tpu.memory_space<vmem>>, %arg7: memref<1x256xf32, #tpu.memory_space<vmem>>, %arg8: memref<1x8x128xf32, #tpu.memory_space<vmem>>, %arg9: memref<8x256xbf16, #tpu.memory_space<vmem>>) attributes {dimension_semantics = [#tpu.dimension_semantics<parallel>, #tpu.dimension_semantics<arbitrary>], iteration_bounds = array<i64: 2, 1>, scalar_prefetch = 0 : i64, scratch_operands = 1 : i64, tpu.core_type = #tpu.core_type<tc>, window_params = [{transform_indices = @transform_0, window_bounds = array<i64: 1, 8, 128>}, {transform_indices = @transform_1, window_bounds = array<i64: 1, 8, 128>}, {pipeline_mode = #tpu.pipeline_mode<synchronous>, transform_indices = @transform_2, window_bounds = array<i64: 128, 128>}, {pipeline_mode = #tpu.pipeline_mode<synchronous>, transform_indices = @transform_3, window_bounds = array<i64: 1, 128>}, {pipeline_mode = #tpu.pipeline_mode<synchronous>, transform_indices = @transform_4, window_bounds = array<i64: 128, 256>}, {pipeline_mode = #tpu.pipeline_mode<synchronous>, transform_indices = @transform_5, window_bounds = array<i64: 1, 256>}, {transform_indices = @transform_6, window_bounds = array<i64: 1, 8, 128>}]} {
    %c0_i32 = arith.constant 0 : i32
    %0 = arith.cmpi eq, %arg1, %c0_i32 : i32
    %1 = arith.extui %0 : i1 to i32
    %c0_i32_0 = arith.constant 0 : i32
    %2 = arith.cmpi ne, %1, %c0_i32_0 : i32
    scf.if %2 {
      %c0_17 = arith.constant 0 : index
      %c0_18 = arith.constant 0 : index
      %c0_19 = arith.constant 0 : index
      %33 = vector.load %arg3[%c0_17, %c0_18, %c0_19] : memref<1x8x128xbf16, #tpu.memory_space<vmem>>, vector<1x8x128xbf16>
      %34 = vector.shape_cast %33 : vector<1x8x128xbf16> to vector<8x128xbf16>
      %c0_20 = arith.constant 0 : index
      %c0_21 = arith.constant 0 : index
      %35 = vector.load %arg6[%c0_20, %c0_21] : memref<128x256xbf16, #tpu.memory_space<vmem>>, vector<128x256xbf16>
      %cst_22 = arith.constant dense<0.000000e+00> : vector<8x256xf32>
      %36 = tpu.matmul %34, %35, %cst_22 {dimension_numbers = #tpu.dot_dimension_numbers<[1], [0], [0], [1], [0, 0, 1, 1], [], []>} : vector<8x128xbf16>, vector<128x256xbf16>, vector<8x256xf32> -> vector<8x256xf32>
      %c0_23 = arith.constant 0 : index
      %c0_24 = arith.constant 0 : index
      %37 = vector.load %arg7[%c0_23, %c0_24] : memref<1x256xf32, #tpu.memory_space<vmem>>, vector<1x256xf32>
      %38 = vector.shape_cast %37 : vector<1x256xf32> to vector<256xf32>
      %39 = vector.shape_cast %38 : vector<256xf32> to vector<1x256xf32>
      %40 = vector.broadcast %39 : vector<1x256xf32> to vector<8x256xf32>
      %41 = arith.addf %36, %40 : vector<8x256xf32>
      %42 = arith.truncf %41 : vector<8x256xf32> to vector<8x256xbf16>
      %c0_25 = arith.constant 0 : index
      %c0_26 = arith.constant 0 : index
      %43 = vector.load %arg9[%c0_25, %c0_26] : memref<8x256xbf16, #tpu.memory_space<vmem>>, vector<8x256xbf16>
      tpu.vector_store %arg9[%c0_25, %c0_26], %42 {strides = array<i32>} : memref<8x256xbf16, #tpu.memory_space<vmem>>, vector<8x256xbf16>,
    } else {
    }
    %c0 = arith.constant 0 : index
    %c0_1 = arith.constant 0 : index
    %c0_2 = arith.constant 0 : index
    %3 = vector.load %arg2[%c0, %c0_1, %c0_2] : memref<1x8x128xf32, #tpu.memory_space<vmem>>, vector<1x8x128xf32>
    %4 = vector.shape_cast %3 : vector<1x8x128xf32> to vector<8x128xf32>
    %5 = arith.truncf %4 : vector<8x128xf32> to vector<8x128xbf16>
    %c0_3 = arith.constant 0 : index
    %c0_4 = arith.constant 0 : index
    %6 = vector.load %arg4[%c0_3, %c0_4] : memref<128x128xbf16, #tpu.memory_space<vmem>>, vector<128x128xbf16>
    %cst = arith.constant dense<0.000000e+00> : vector<8x128xf32>
    %7 = tpu.matmul %5, %6, %cst {dimension_numbers = #tpu.dot_dimension_numbers<[1], [0], [0], [1], [0, 0, 1, 1], [], []>} : vector<8x128xbf16>, vector<128x128xbf16>, vector<8x128xf32> -> vector<8x128xf32>
    %c0_5 = arith.constant 0 : index
    %c0_6 = arith.constant 0 : index
    %8 = vector.load %arg5[%c0_5, %c0_6] : memref<1x128xf32, #tpu.memory_space<vmem>>, vector<1x128xf32>
    %9 = vector.shape_cast %8 : vector<1x128xf32> to vector<128xf32>
    %10 = vector.shape_cast %9 : vector<128xf32> to vector<1x128xf32>
    %11 = vector.broadcast %10 : vector<1x128xf32> to vector<8x128xf32>
    %12 = arith.addf %7, %11 : vector<8x128xf32>
    %c0_7 = arith.constant 0 : index
    %c0_8 = arith.constant 0 : index
    %13 = vector.load %arg9[%c0_7, %c0_8] : memref<8x256xbf16, #tpu.memory_space<vmem>>, vector<8x128xbf16>
    %c0_9 = arith.constant 0 : index
    %c128 = arith.constant 128 : index
    %14 = vector.load %arg9[%c0_9, %c128] : memref<8x256xbf16, #tpu.memory_space<vmem>>, vector<8x128xbf16>
    %15 = arith.truncf %12 : vector<8x128xf32> to vector<8x128xbf16>
    %cst_10 = arith.constant dense<0.000000e+00> : vector<8x8xf32>
    %16 = tpu.matmul %15, %13, %cst_10 {dimension_numbers = #tpu.dot_dimension_numbers<[1], [1], [0], [0], [0, 0, 1, 0], [], []>} : vector<8x128xbf16>, vector<8x128xbf16>, vector<8x8xf32> -> vector<8x8xf32>
    %cst_11 = arith.constant dense<0xFF800000> : vector<8xf32>
    %17 = vector.multi_reduction <maximumf>, %16, %cst_11 [1] : vector<8x8xf32> to vector<8xf32>
    %18 = vector.shape_cast %17 : vector<8xf32> to vector<8x1xf32>
    %19 = vector.broadcast %18 : vector<8x1xf32> to vector<8x8xf32>
    %20 = arith.subf %16, %19 : vector<8x8xf32>
    %21 = math.exp %20 : vector<8x8xf32>
    %cst_12 = arith.constant dense<0.000000e+00> : vector<8xf32>
    %22 = vector.multi_reduction <add>, %21, %cst_12 [1] : vector<8x8xf32> to vector<8xf32>
    %23 = vector.shape_cast %22 : vector<8xf32> to vector<8x1xf32>
    %24 = arith.truncf %21 : vector<8x8xf32> to vector<8x8xbf16>
    %cst_13 = arith.constant dense<0.000000e+00> : vector<8x128xf32>
    %25 = tpu.matmul %24, %14, %cst_13 {dimension_numbers = #tpu.dot_dimension_numbers<[1], [0], [0], [1], [0, 0, 1, 1], [], []>} : vector<8x8xbf16>, vector<8x128xbf16>, vector<8x128xf32> -> vector<8x128xf32>
    %26 = tpu.reciprocal %23 {approx = true} : vector<8x1xf32> -> vector<8x1xf32>
    %27 = vector.broadcast %26 : vector<8x1xf32> to vector<8x128xf32>
    %28 = arith.mulf %25, %27 : vector<8x128xf32>
    %29 = arith.addf %4, %28 : vector<8x128xf32>
    %c0_14 = arith.constant 0 : index
    %c0_15 = arith.constant 0 : index
    %c0_16 = arith.constant 0 : index
    %30 = vector.load %arg8[%c0_14, %c0_15, %c0_16] : memref<1x8x128xf32, #tpu.memory_space<vmem>>, vector<1x8x128xf32>
    %31 = vector.shape_cast %30 : vector<1x8x128xf32> to vector<8x128xf32>
    %32 = vector.shape_cast %29 : vector<8x128xf32> to vector<1x8x128xf32>
    tpu.vector_store %arg8[%c0_14, %c0_15, %c0_16], %32 {strides = array<i32>} : memref<1x8x128xf32, #tpu.memory_space<vmem>>, vector<1x8x128xf32>,
    return
  }
  func.func @transform_0(%arg0: i32, %arg1: i32) -> (i32, i32, i32) {
    %c0_i32 = arith.constant 0 : i32
    %c0_i32_0 = arith.constant 0 : i32
    return %arg0, %arg1, %c0_i32 : i32, i32, i32
  }
  func.func @transform_1(%arg0: i32, %arg1: i32) -> (i32, i32, i32) {
    %c0_i32 = arith.constant 0 : i32
    %c0_i32_0 = arith.constant 0 : i32
    %c0_i32_1 = arith.constant 0 : i32
    return %arg0, %c0_i32, %c0_i32_0 : i32, i32, i32
  }
  func.func @transform_2(%arg0: i32, %arg1: i32) -> (i32, i32) {
    %c0_i32 = arith.constant 0 : i32
    %c0_i32_0 = arith.constant 0 : i32
    %c0_i32_1 = arith.constant 0 : i32
    return %c0_i32, %c0_i32_0 : i32, i32
  }
  func.func @transform_3(%arg0: i32, %arg1: i32) -> (i32, i32) {
    %c0_i32 = arith.constant 0 : i32
    %c0_i32_0 = arith.constant 0 : i32
    %c0_i32_1 = arith.constant 0 : i32
    return %c0_i32, %c0_i32_0 : i32, i32
  }
  func.func @transform_4(%arg0: i32, %arg1: i32) -> (i32, i32) {
    %c0_i32 = arith.constant 0 : i32
    %c0_i32_0 = arith.constant 0 : i32
    %c0_i32_1 = arith.constant 0 : i32
    return %c0_i32, %c0_i32_0 : i32, i32
  }
  func.func @transform_5(%arg0: i32, %arg1: i32) -> (i32, i32) {
    %c0_i32 = arith.constant 0 : i32
    %c0_i32_0 = arith.constant 0 : i32
    %c0_i32_1 = arith.constant 0 : i32
    return %c0_i32, %c0_i32_0 : i32, i32
  }
  func.func @transform_6(%arg0: i32, %arg1: i32) -> (i32, i32, i32) {
    %c0_i32 = arith.constant 0 : i32
    %c0_i32_0 = arith.constant 0 : i32
    return %arg0, %arg1, %c0_i32 : i32, i32, i32
  }
}

</mosaic_0001>

<llo_original>
// kernel: tpu_custom_call.1
$region0: #{tpu_custom_call.1}
  #allocation0 [shape = 'u32[]', space=smem, size = 0x4, offset = 0x4, fixed_abs, tag = 'smem constant byte address 0x4 - core index']
  #allocation1 [shape = 'u32[144,128]{1,0:T(1,128)}', space=vmem, size = 0x12000, scoped, tag = 'internal scratch']
  #allocation2 [shape = 'bf16[8,256]{1,0:T(8,128)(2,1)}', space=vmem, size = 0x1000, scoped, tag = 'scratch operand']
  %s0 = inlined_call_operand.hbm [shape: f32[2,8,128], index: 0, kind: input, shape index: {}]
  %s1 = inlined_call_operand.hbm [shape: bf16[2,8,128], index: 1, kind: input, shape index: {}]
  %s2 = inlined_call_operand.hbm [shape: bf16[128,128], index: 2, kind: input, shape index: {}]
  %s3 = inlined_call_operand.vmem [shape: f32[1,128], index: 3, kind: input, shape index: {}]
  %s4 = inlined_call_operand.hbm [shape: bf16[128,256], index: 4, kind: input, shape index: {}]
  %s5 = inlined_call_operand.vmem [shape: f32[1,256], index: 5, kind: input, shape index: {}]
  %s6 = inlined_call_operand.hbm [shape: f32[2,8,128], index: 6, kind: output, shape index: {}]
  %s7 = sld [smem:[#allocation0]]
  $region77: #{tpu_custom_call.1} parent=0
    _
  %s9 = ssub.s32 1, %s7
  %s10 = scalar_select 0, %s9, %s7
  $region1: #{tpu_custom_call.1} parent=0
    #allocation3 [shape = 'u8[8192]{0}', space=vmem, size = 0x2000, scoped, tag = 'input window, operand 0']
    #allocation4 [shape = 's32[2]{0}', space=sflag, size = 0x8, scoped, tag = 'scoped memory for tpu_custom_call.1']
    #allocation5 [shape = 's32[2]{0}', space=sflag, size = 0x8, scoped, tag = 'scoped memory for tpu_custom_call.1']
    #allocation6 [shape = 'u8[4096]{0}', space=vmem, size = 0x1000, scoped, tag = 'input window, operand 1']
    #allocation7 [shape = 's32[2]{0}', space=sflag, size = 0x8, scoped, tag = 'scoped memory for tpu_custom_call.1']
    #allocation8 [shape = 'u8[32768]{0}', space=vmem, size = 0x8000, scoped, tag = 'input window, operand 2, single buffered']
    #allocation9 [shape = 'u8[65536]{0}', space=vmem, size = 0x10000, scoped, tag = 'input window, operand 4, single buffered']
    #allocation10 [shape = 's32[1]{0}', space=sflag, size = 0x4, scoped, tag = 'scoped memory for tpu_custom_call.1']
    #allocation11 [shape = 'u8[8192]{0}', space=vmem, size = 0x2000, scoped, tag = 'output window, operand 0']
    %11 = vsyncpa [#allocation4], 0
    %s12 = scalar_lea.sflag [#allocation4], 1
    %13 = vsyncpa %s12, 0
    %14 = vsyncpa [#allocation7], 0
    %s15 = scalar_lea.sflag [#allocation7], 1
    %16 = vsyncpa %s15, 0
    %17 = vsyncpa [#allocation10], 0
    %18 = vsyncpa [#allocation5], 0
    %s19 = scalar_lea.sflag [#allocation5], 1
    %20 = vsyncpa %s19, 0
    loop: start=0, step=1, limit=4
    $region2: #{tpu_custom_call.1} parent=1 // loop_pre_header
      _
    $region3: #{tpu_custom_call.1} parent=1 // loop_header
      %s22 = sphi 0, %s26
      %p23 = scmp.ge.s32.totalorder %s22, 4
      %s29 = sphi 0, %s41
      %s30 = sphi 0, %s37
      %s31 = sphi 0, %s29
      %s32 = sphi 0, %s30
      %s33 = sphi 0, %s31
      %s34 = sphi 0, %s32
      %s46 = sphi 0, %s48
      %s49 = sphi 0, %s46
      %s50 = sphi 0, %s49
      %s66 = sphi 0, %s50
      %s72 = sphi 0, %s74
      %s75 = sphi 0, %s72
      %s76 = sphi 0, %s75
      %s92 = sphi 0, %s76
      %s96 = sphi 0, %s96
      %s98 = sphi 0, %s96
      %s99 = sphi 0, %s98
      %s113 = sphi 0, %s99
      %s117 = sphi 0, %s117
      %s119 = sphi 0, %s117
      %s120 = sphi 0, %s119
      %s134 = sphi 0, %s120
      %s138 = sphi 0, %s138
      %s140 = sphi 0, %s138
      %s141 = sphi 0, %s140
      %s155 = sphi 0, %s141
      %s159 = sphi 0, %s159
      %s161 = sphi 0, %s159
      %s162 = sphi 0, %s161
      %s176 = sphi 0, %s162
      %s184 = sphi 0, %s186
      %s187 = sphi 0, %s184
      %s188 = sphi 0, %s187
      %s204 = sphi 0, %s188
    $region4: #{tpu_custom_call.1} parent=1 // loop_header_branch
      %25 = sbr.rel (%p23) target = $region8
    $region5: #{tpu_custom_call.1} parent=1 // loop_body
      %s27 = ssub.s32 %s22, 1
      %s28 = ssub.s32 %s22, 2
      %s35 = sadd.s32 1, %s30
      %p36 = scmp.ge.s32.totalorder %s35, 1
      %s37 = scalar_select %p36, 0, %s35
      %s38 = sadd.s32 1, %s29
      %s39 = scalar_select %p36, %s38, %s29
      %p40 = scmp.ge.s32.totalorder %s39, 2
      %s41 = scalar_select %p40, 0, %s39
      %s42 = ssub.s32 %s29, %s41
      %s43 = ssub.s32 %s30, %s37
      %s44 = sor.u32 %s42, %s43
      %p45 = scmp.eq.s32.totalorder %s44, 0
      %s47 = sadd.s32 %s46, 1
      %s48 = scalar_select %p45, %s46, %s47
      %p51 = pneg %p45
      %p52 = scmp.eq.s32.totalorder %s22, 1
      %p53 = por %p51, %p52
      %p54 = scmp.ne.s32.totalorder %s46, %s49
      %p55 = scmp.eq.s32.totalorder %s22, 0
      %p56 = por %p54, %p55
      %p57 = scmp.ne.s32.totalorder %s46, %s49
      %p58 = scmp.eq.s32.totalorder %s27, 1
      %p59 = por %p57, %p58
      %p60 = scmp.ne.s32.totalorder %s49, %s50
      %p61 = scmp.eq.s32.totalorder %s27, 0
      %p62 = por %p60, %p61
      %p63 = scmp.ne.s32.totalorder %s49, %s50
      %p64 = scmp.eq.s32.totalorder %s28, 1
      %p65 = por %p63, %p64
      %p67 = scmp.ne.s32.totalorder %s50, %s66
      %p68 = scmp.eq.s32.totalorder %s28, 0
      %p69 = por %p67, %p68
      %s70 = ssub.s32 %s29, %s41
      %p71 = scmp.eq.s32.totalorder %s70, 0
      %s73 = sadd.s32 %s72, 1
      %s74 = scalar_select %p71, %s72, %s73
      %p77 = pneg %p71
      %p78 = scmp.eq.s32.totalorder %s22, 1
      %p79 = por %p77, %p78
      %p80 = scmp.ne.s32.totalorder %s72, %s75
      %p81 = scmp.eq.s32.totalorder %s22, 0
      %p82 = por %p80, %p81
      %p83 = scmp.ne.s32.totalorder %s72, %s75
      %p84 = scmp.eq.s32.totalorder %s27, 1
      %p85 = por %p83, %p84
      %p86 = scmp.ne.s32.totalorder %s75, %s76
      %p87 = scmp.eq.s32.totalorder %s27, 0
      %p88 = por %p86, %p87
      %p89 = scmp.ne.s32.totalorder %s75, %s76
      %p90 = scmp.eq.s32.totalorder %s28, 1
      %p91 = por %p89, %p90
      %p93 = scmp.ne.s32.totalorder %s76, %s92
      %p94 = scmp.eq.s32.totalorder %s28, 0
      %p95 = por %p93, %p94
      %s97 = sadd.s32 %s96, 1
      %p100 = scmp.eq.s32.totalorder %s22, 1
      %p101 = scmp.ne.s32.totalorder %s96, %s98
      %p102 = scmp.eq.s32.totalorder %s22, 0
      %p103 = por %p101, %p102
      %p104 = scmp.ne.s32.totalorder %s96, %s98
      %p105 = scmp.eq.s32.totalorder %s27, 1
      %p106 = por %p104, %p105
      %p107 = scmp.ne.s32.totalorder %s98, %s99
      %p108 = scmp.eq.s32.totalorder %s27, 0
      %p109 = por %p107, %p108
      %p110 = scmp.ne.s32.totalorder %s98, %s99
      %p111 = scmp.eq.s32.totalorder %s28, 1
      %p112 = por %p110, %p111
      %p114 = scmp.ne.s32.totalorder %s99, %s113
      %p115 = scmp.eq.s32.totalorder %s28, 0
      %p116 = por %p114, %p115
      %s118 = sadd.s32 %s117, 1
      %p121 = scmp.eq.s32.totalorder %s22, 1
      %p122 = scmp.ne.s32.totalorder %s117, %s119
      %p123 = scmp.eq.s32.totalorder %s22, 0
      %p124 = por %p122, %p123
      %p125 = scmp.ne.s32.totalorder %s117, %s119
      %p126 = scmp.eq.s32.totalorder %s27, 1
      %p127 = por %p125, %p126
      %p128 = scmp.ne.s32.totalorder %s119, %s120
      %p129 = scmp.eq.s32.totalorder %s27, 0
      %p130 = por %p128, %p129
      %p131 = scmp.ne.s32.totalorder %s119, %s120
      %p132 = scmp.eq.s32.totalorder %s28, 1
      %p133 = por %p131, %p132
      %p135 = scmp.ne.s32.totalorder %s120, %s134
      %p136 = scmp.eq.s32.totalorder %s28, 0
      %p137 = por %p135, %p136
      %s139 = sadd.s32 %s138, 1
      %p142 = scmp.eq.s32.totalorder %s22, 1
      %p143 = scmp.ne.s32.totalorder %s138, %s140
      %p144 = scmp.eq.s32.totalorder %s22, 0
      %p145 = por %p143, %p144
      %p146 = scmp.ne.s32.totalorder %s138, %s140
      %p147 = scmp.eq.s32.totalorder %s27, 1
      %p148 = por %p146, %p147
      %p149 = scmp.ne.s32.totalorder %s140, %s141
      %p150 = scmp.eq.s32.totalorder %s27, 0
      %p151 = por %p149, %p150
      %p152 = scmp.ne.s32.totalorder %s140, %s141
      %p153 = scmp.eq.s32.totalorder %s28, 1
      %p154 = por %p152, %p153
      %p156 = scmp.ne.s32.totalorder %s141, %s155
      %p157 = scmp.eq.s32.totalorder %s28, 0
      %p158 = por %p156, %p157
      %s160 = sadd.s32 %s159, 1
      %p163 = scmp.eq.s32.totalorder %s22, 1
      %p164 = scmp.ne.s32.totalorder %s159, %s161
      %p165 = scmp.eq.s32.totalorder %s22, 0
      %p166 = por %p164, %p165
      %p167 = scmp.ne.s32.totalorder %s159, %s161
      %p168 = scmp.eq.s32.totalorder %s27, 1
      %p169 = por %p167, %p168
      %p170 = scmp.ne.s32.totalorder %s161, %s162
      %p171 = scmp.eq.s32.totalorder %s27, 0
      %p172 = por %p170, %p171
      %p173 = scmp.ne.s32.totalorder %s161, %s162
      %p174 = scmp.eq.s32.totalorder %s28, 1
      %p175 = por %p173, %p174
      %p177 = scmp.ne.s32.totalorder %s162, %s176
      %p178 = scmp.eq.s32.totalorder %s28, 0
      %p179 = por %p177, %p178
      %s180 = ssub.s32 %s29, %s41
      %s181 = ssub.s32 %s30, %s37
      %s182 = sor.u32 %s180, %s181
      %p183 = scmp.eq.s32.totalorder %s182, 0
      %s185 = sadd.s32 %s184, 1
      %s186 = scalar_select %p183, %s184, %s185
      %p189 = pneg %p183
      %p190 = scmp.eq.s32.totalorder %s22, 1
      %p191 = por %p189, %p190
      %p192 = scmp.ne.s32.totalorder %s184, %s187
      %p193 = scmp.eq.s32.totalorder %s22, 0
      %p194 = por %p192, %p193
      %p195 = scmp.ne.s32.totalorder %s184, %s187
      %p196 = scmp.eq.s32.totalorder %s27, 1
      %p197 = por %p195, %p196
      %p198 = scmp.ne.s32.totalorder %s187, %s188
      %p199 = scmp.eq.s32.totalorder %s27, 0
      %p200 = por %p198, %p199
      %p201 = scmp.ne.s32.totalorder %s187, %s188
      %p202 = scmp.eq.s32.totalorder %s28, 1
      %p203 = por %p201, %p202
      %p205 = scmp.ne.s32.totalorder %s188, %s204
      %p206 = scmp.eq.s32.totalorder %s28, 0
      %p207 = por %p205, %p206
      %p208 = scmp.le.s32.totalorder 1, %s22
      %p209 = scmp.lt.s32.totalorder %s22, 3
      %p210 = pnand %p208, %p209
      %p211 = pneg %p210
      // Predicated region
      $region9: #{tpu_custom_call.1} parent=5 // pred_check
        _
      $region10: #{tpu_custom_call.1} parent=5 // pred_check_branch
        %213 = sbr.rel (%p210) target = $region12
      $region11: #{tpu_custom_call.1} parent=5 // pred_region
        %s214 = ssub.s32 %s22, 1
        // Predicated region
        $region13: #{tpu_custom_call.1} parent=11 // pred_check
          %p215 = pneg %p109
        $region14: #{tpu_custom_call.1} parent=11 // pred_check_branch
          %217 = sbr.rel (%p215) target = $region16
        $region15: #{tpu_custom_call.1} parent=11 // pred_region
          %s219 = ssub.s32 1024, 1024
          %220 = vsyncadd [#allocation7], %s219
          %s221 = sshll.u32 [#allocation8], 4
          %s222 = int_to_ptr.vmem [resolvable:$true] %s221
          %227 = dma.hbm_to_vmem [thread:$0]  %s2, 1024, %s222, [#allocation7], 64, 64, 4
        $region16: #{tpu_custom_call.1} parent=11 // pred_fallthru
          _
        // Predicated region
        $region17: #{tpu_custom_call.1} parent=11 // pred_check
          %p228 = pneg %p130
        $region18: #{tpu_custom_call.1} parent=11 // pred_check_branch
          %230 = sbr.rel (%p228) target = $region20
        $region19: #{tpu_custom_call.1} parent=11 // pred_region
          _
        $region20: #{tpu_custom_call.1} parent=11 // pred_fallthru
          _
        // Predicated region
        $region21: #{tpu_custom_call.1} parent=11 // pred_check
          %p231 = pneg %p151
        $region22: #{tpu_custom_call.1} parent=11 // pred_check_branch
          %233 = sbr.rel (%p231) target = $region24
        $region23: #{tpu_custom_call.1} parent=11 // pred_region
          %s235 = ssub.s32 2048, 2048
          %236 = vsyncadd [#allocation10], %s235
          %s237 = sshll.u32 [#allocation9], 4
          %s238 = int_to_ptr.vmem [resolvable:$true] %s237
          %243 = dma.hbm_to_vmem [thread:$0]  %s4, 2048, %s238, [#allocation10], 128, 128, 8
        $region24: #{tpu_custom_call.1} parent=11 // pred_fallthru
          _
        // Predicated region
        $region25: #{tpu_custom_call.1} parent=11 // pred_check
          %p244 = pneg %p172
        $region26: #{tpu_custom_call.1} parent=11 // pred_check_branch
          %246 = sbr.rel (%p244) target = $region28
        $region27: #{tpu_custom_call.1} parent=11 // pred_region
          _
        $region28: #{tpu_custom_call.1} parent=11 // pred_fallthru
          _
      $region12: #{tpu_custom_call.1} parent=5 // pred_fallthru
        _
      %p247 = scmp.lt.s32.totalorder %s22, 2
      // Predicated region
      $region29: #{tpu_custom_call.1} parent=5 // pred_check
        %p248 = pneg %p247
      $region30: #{tpu_custom_call.1} parent=5 // pred_check_branch
        %250 = sbr.rel (%p248) target = $region32
      $region31: #{tpu_custom_call.1} parent=5 // pred_region
        // Predicated region
        $region33: #{tpu_custom_call.1} parent=31 // pred_check
          %p251 = pneg %p56
        $region34: #{tpu_custom_call.1} parent=31 // pred_check_branch
          %253 = sbr.rel (%p251) target = $region36
        $region35: #{tpu_custom_call.1} parent=31 // pred_region
          %s254 = sand.u32 %s46, 1
          %s255 = scalar_lea.sflag [#allocation4], %s254
          %s256 = sand.u32 %s46, 1
          %s257 = smul.addr %s256, 8
          %s258 = scalar_lea.vmem [#allocation3], %s257
          %s260 = ssub.s32 128, 128
          %261 = vsyncadd %s255, %s260
          %s262 = sadd.s32 %s30, %s29
          %s263 = smul.addr %s262, 128
          %s264 = scalar_lea.hbm %s0, %s263
          %s266 = sshll.u32 %s258, 4
          %s267 = int_to_ptr.vmem [resolvable:$true] %s266
          %269 = dma.hbm_to_vmem [thread:$0]  %s264, 128, %s267, %s255
        $region36: #{tpu_custom_call.1} parent=31 // pred_fallthru
          _
        // Predicated region
        $region37: #{tpu_custom_call.1} parent=31 // pred_check
          %p270 = pneg %p82
        $region38: #{tpu_custom_call.1} parent=31 // pred_check_branch
          %272 = sbr.rel (%p270) target = $region40
        $region39: #{tpu_custom_call.1} parent=31 // pred_region
          %s273 = sand.u32 %s22, 1
          %s274 = scalar_lea.sflag [#allocation7], %s273
          %s275 = sand.u32 %s72, 1
          %s276 = smul.addr %s275, 4
          %s277 = scalar_lea.vmem [#allocation6], %s276
          %s279 = ssub.s32 64, 64
          %280 = vsyncadd %s274, %s279
          %s281 = smul.addr %s29, 64
          %s282 = scalar_lea.hbm %s1, %s281
          %s284 = sshll.u32 %s277, 4
          %s285 = int_to_ptr.vmem [resolvable:$true] %s284
          %287 = dma.hbm_to_vmem [thread:$0]  %s282, 64, %s285, %s274
        $region40: #{tpu_custom_call.1} parent=31 // pred_fallthru
          _
      $region32: #{tpu_custom_call.1} parent=5 // pred_fallthru
        _
      %p288 = scmp.le.s32.totalorder 1, %s22
      %p289 = scmp.lt.s32.totalorder %s22, 3
      %p290 = pnand %p288, %p289
      %p291 = pneg %p290
      // Predicated region
      $region41: #{tpu_custom_call.1} parent=5 // pred_check
        _
      $region42: #{tpu_custom_call.1} parent=5 // pred_check_branch
        %293 = sbr.rel (%p290) target = $region44
      $region43: #{tpu_custom_call.1} parent=5 // pred_region
        %s294 = ssub.s32 %s22, 1
        %s295 = sand.u32 %s49, 1
        %s296 = scalar_lea.sflag [#allocation4], %s295
        %s297 = sand.u32 %s49, 1
        %s298 = smul.addr %s297, 8
        %s299 = scalar_lea.vmem [#allocation3], %s298
        // Predicated region
        $region45: #{tpu_custom_call.1} parent=43 // pred_check
          %p300 = pneg %p62
        $region46: #{tpu_custom_call.1} parent=43 // pred_check_branch
          %302 = sbr.rel (%p300) target = $region48
        $region47: #{tpu_custom_call.1} parent=43 // pred_region
          %303 = dma.done %s296, 128
        $region48: #{tpu_custom_call.1} parent=43 // pred_fallthru
          _
        %s304 = sand.u32 %s27, 1
        %s305 = scalar_lea.sflag [#allocation7], %s304
        %s306 = sand.u32 %s75, 1
        %s307 = smul.addr %s306, 4
        %s308 = scalar_lea.vmem [#allocation6], %s307
        // Predicated region
        $region49: #{tpu_custom_call.1} parent=43 // pred_check
          %p309 = pneg %p88
        $region50: #{tpu_custom_call.1} parent=43 // pred_check_branch
          %311 = sbr.rel (%p309) target = $region52
        $region51: #{tpu_custom_call.1} parent=43 // pred_region
          %312 = dma.done %s305, 64
        $region52: #{tpu_custom_call.1} parent=43 // pred_fallthru
          _
        // Predicated region
        $region53: #{tpu_custom_call.1} parent=43 // pred_check
          %p313 = pneg %p109
        $region54: #{tpu_custom_call.1} parent=43 // pred_check_branch
          %315 = sbr.rel (%p313) target = $region56
        $region55: #{tpu_custom_call.1} parent=43 // pred_region
          %316 = dma.done [#allocation7], 1024
        $region56: #{tpu_custom_call.1} parent=43 // pred_fallthru
          _
        // Predicated region
        $region57: #{tpu_custom_call.1} parent=43 // pred_check
          %p317 = pneg %p151
        $region58: #{tpu_custom_call.1} parent=43 // pred_check_branch
          %319 = sbr.rel (%p317) target = $region60
        $region59: #{tpu_custom_call.1} parent=43 // pred_region
          %320 = dma.done [#allocation10], 2048
        $region60: #{tpu_custom_call.1} parent=43 // pred_fallthru
          _
        %s321 = sand.u32 %s49, 1
        %s322 = scalar_lea.sflag [#allocation4], %s321
        %s323 = sand.u32 %s49, 1
        %s324 = smul.addr %s323, 8
        %s325 = scalar_lea.vmem [#allocation3], %s324
        %p326 = pneg %p62
        %p327 = pneg %p59
        %s328 = sand.u32 %s27, 1
        %s329 = scalar_lea.sflag [#allocation7], %s328
        %s330 = sand.u32 %s75, 1
        %s331 = smul.addr %s330, 4
        %s332 = scalar_lea.vmem [#allocation6], %s331
        %p333 = pneg %p88
        %p334 = pneg %p85
        %p335 = pneg %p109
        %p336 = pneg %p106
        %p337 = pneg %p130
        %p338 = pneg %p127
        %p339 = pneg %p151
        %p340 = pneg %p148
        %p341 = pneg %p172
        %p342 = pneg %p169
        %p343 = pneg %p200
        %p344 = pneg %p197
        %s345 = sand.u32 %s187, 1
        %s346 = scalar_lea.sflag [#allocation5], %s345
        %s347 = sand.u32 %s187, 1
        %s348 = smul.addr %s347, 8
        %s349 = scalar_lea.vmem [#allocation11], %s348
        %p351 = scmp.eq.s32.totalorder %s32, 0
        // Predicated region
        $region61: #{tpu_custom_call.1} parent=43 // pred_check
          %p352 = pneg %p351
        $region62: #{tpu_custom_call.1} parent=43 // pred_check_branch
          %354 = sbr.rel (%p352) target = $region64
        $region63: #{tpu_custom_call.1} parent=43 // pred_region
          %v355 = vld [vmem:[%s308] sm:$0xf]
          %v356 = vld [vmem:[#allocation9] sm:$0xff]
          %v357 = vld [vmem:[#allocation9 + $0x8] sm:$0xff]
          %v358 = vld [vmem:[#allocation9 + $0x10] sm:$0xff]
          %v359 = vld [vmem:[#allocation9 + $0x18] sm:$0xff]
          %v360 = vld [vmem:[#allocation9 + $0x20] sm:$0xff]
          %v361 = vld [vmem:[#allocation9 + $0x28] sm:$0xff]
          %v362 = vld [vmem:[#allocation9 + $0x30] sm:$0xff]
          %v363 = vld [vmem:[#allocation9 + $0x38] sm:$0xff]
          %v364 = vld [vmem:[#allocation9 + $0x40] sm:$0xff]
          %v365 = vld [vmem:[#allocation9 + $0x48] sm:$0xff]
          %v366 = vld [vmem:[#allocation9 + $0x50] sm:$0xff]
          %v367 = vld [vmem:[#allocation9 + $0x58] sm:$0xff]
          %v368 = vld [vmem:[#allocation9 + $0x60] sm:$0xff]
          %v369 = vld [vmem:[#allocation9 + $0x68] sm:$0xff]
          %v370 = vld [vmem:[#allocation9 + $0x70] sm:$0xff]
          %v371 = vld [vmem:[#allocation9 + $0x78] sm:$0xff]
          %v372 = vld [vmem:[%s5] sm:$0x3]
          %v374 = vlaneseq
          %v375 = vshrl.u32 %v374, 7
          %v376 = vsub.s32 0, %v375
          %v377 = vrot.slane %v372, %v376
          %v378 = vlaneseq
          %v379 = vshrl.u32 %v378, 7
          %v380 = vsub.s32 1, %v379
          %v381 = vrot.slane %v372, %v380
          %v400 = vunpack.c.l.b16 %v356
          %v401 = vunpack.c.h.b16 %v356
          %v402 = vunpack.c.l.b16 %v357
          %v403 = vunpack.c.h.b16 %v357
          %v404 = vunpack.c.l.b16 %v358
          %v405 = vunpack.c.h.b16 %v358
          %v406 = vunpack.c.l.b16 %v359
          %v407 = vunpack.c.h.b16 %v359
          %v408 = vunpack.c.l.b16 %v360
          %v409 = vunpack.c.h.b16 %v360
          %v410 = vunpack.c.l.b16 %v361
          %v411 = vunpack.c.h.b16 %v361
          %v412 = vunpack.c.l.b16 %v362
          %v413 = vunpack.c.h.b16 %v362
          %v414 = vunpack.c.l.b16 %v363
          %v415 = vunpack.c.h.b16 %v363
          %v416 = vunpack.c.l.b16 %v364
          %v417 = vunpack.c.h.b16 %v364
          %v418 = vunpack.c.l.b16 %v365
          %v419 = vunpack.c.h.b16 %v365
          %v420 = vunpack.c.l.b16 %v366
          %v421 = vunpack.c.h.b16 %v366
          %v422 = vunpack.c.l.b16 %v367
          %v423 = vunpack.c.h.b16 %v367
          %v424 = vunpack.c.l.b16 %v368
          %v425 = vunpack.c.h.b16 %v368
          %v426 = vunpack.c.l.b16 %v369
          %v427 = vunpack.c.h.b16 %v369
          %v428 = vunpack.c.l.b16 %v370
          %v429 = vunpack.c.h.b16 %v370
          %v430 = vunpack.c.l.b16 %v371
          %v431 = vunpack.c.h.b16 %v371
          %v432 = vpack.c.b16 %v402, %v400
          %v433 = vpack.c.b16 %v403, %v401
          %v434 = vpack.c.b16 %v406, %v404
          %v435 = vpack.c.b16 %v407, %v405
          %v436 = vpack.c.b16 %v410, %v408
          %v437 = vpack.c.b16 %v411, %v409
          %v438 = vpack.c.b16 %v414, %v412
          %v439 = vpack.c.b16 %v415, %v413
          %v440 = vpack.c.b16 %v418, %v416
          %v441 = vpack.c.b16 %v419, %v417
          %v442 = vpack.c.b16 %v422, %v420
          %v443 = vpack.c.b16 %v423, %v421
          %v444 = vpack.c.b16 %v426, %v424
          %v445 = vpack.c.b16 %v427, %v425
          %v446 = vpack.c.b16 %v430, %v428
          %v447 = vpack.c.b16 %v431, %v429
          %464 = vmatprep.subr.bf16.mxu0 %v433
          %465 = vmatpush1.bf16.msra.mxu0 %v432
          %466 = vmatprep.subr.bf16.mxu0 %v435
          %467 = vmatpush1.bf16.msra.mxu0 %v434
          %468 = vmatprep.subr.bf16.mxu0 %v437
          %469 = vmatpush1.bf16.msra.mxu0 %v436
          %470 = vmatprep.subr.bf16.mxu0 %v439
          %471 = vmatpush1.bf16.msra.mxu0 %v438
          %472 = vmatprep.subr.bf16.mxu0 %v441
          %473 = vmatpush1.bf16.msra.mxu0 %v440
          %474 = vmatprep.subr.bf16.mxu0 %v443
          %475 = vmatpush1.bf16.msra.mxu0 %v442
          %476 = vmatprep.subr.bf16.mxu0 %v445
          %477 = vmatpush1.bf16.msra.mxu0 %v444
          %478 = vmatprep.subr.bf16.mxu0 %v447
          %479 = vmatpush1.bf16.msra.mxu0 %v446
          %480 = vmatprep.subr.bf16.mxu0 0
          %481 = vmatpush1.bf16.msra.mxu0 0
          %482 = vmatprep.subr.bf16.mxu0 0
          %483 = vmatpush1.bf16.msra.mxu0 0
          %484 = vmatprep.subr.bf16.mxu0 0
          %485 = vmatpush1.bf16.msra.mxu0 0
          %486 = vmatprep.subr.bf16.mxu0 0
          %487 = vmatpush1.bf16.msra.mxu0 0
          %488 = vmatprep.subr.bf16.mxu0 0
          %489 = vmatpush1.bf16.msra.mxu0 0
          %490 = vmatprep.subr.bf16.mxu0 0
          %491 = vmatpush1.bf16.msra.mxu0 0
          %492 = vmatprep.subr.bf16.mxu0 0
          %493 = vmatpush1.bf16.msra.mxu0 0
          %494 = vmatprep.subr.bf16.mxu0 0
          %495 = vmatpush1.bf16.msra.mxu0 0
          %496 = vmatprep.mubr.bf16.mxu0 0
          %497 = vmatmul.mubr.bf16.gmra.mrb[0].mxu0 %v355
          %v498 = vpop.f32.mrb[0].mxu0
          %v499 = vadd.f32 %v377, %v498
          %v500 = vpop.f32.mrb[0].mxu0
          %v501 = vadd.f32 %v381, %v500
          %v502 = vpop.f32.mrb[0].mxu0
          %v503 = vpop.f32.mrb[0].mxu0
          %504 = vdwg.mxu0
          %v505 = vpack.c.bf16 %v499, %v499
          %v506 = vpack.c.bf16 %v501, %v501
          %v509 = vunpack.c.l.b16 %v505
          %v510 = vunpack.c.l.b16 %v506
          %v511 = vpack.c.b16 %v510, %v509
          %513 = vst [vmem:[#allocation2] sm:$0xff] %v511
        $region64: #{tpu_custom_call.1} parent=43 // pred_fallthru
          _
        %v514 = vld [vmem:[%s299] sm:$0xff]
        %v515 = vpack.c.bf16 %v514, %v514
        %v516 = vld [vmem:[#allocation8] sm:$0xf]
        %v517 = vld [vmem:[#allocation8 + $0x4] sm:$0xf]
        %v518 = vld [vmem:[#allocation8 + $0x8] sm:$0xf]
        %v519 = vld [vmem:[#allocation8 + $0xc] sm:$0xf]
        %v520 = vld [vmem:[#allocation8 + $0x10] sm:$0xf]
        %v521 = vld [vmem:[#allocation8 + $0x14] sm:$0xf]
        %v522 = vld [vmem:[#allocation8 + $0x18] sm:$0xf]
        %v523 = vld [vmem:[#allocation8 + $0x1c] sm:$0xf]
        %v524 = vld [vmem:[#allocation8 + $0x20] sm:$0xf]
        %v525 = vld [vmem:[#allocation8 + $0x24] sm:$0xf]
        %v526 = vld [vmem:[#allocation8 + $0x28] sm:$0xf]
        %v527 = vld [vmem:[#allocation8 + $0x2c] sm:$0xf]
        %v528 = vld [vmem:[#allocation8 + $0x30] sm:$0xf]
        %v529 = vld [vmem:[#allocation8 + $0x34] sm:$0xf]
        %v530 = vld [vmem:[#allocation8 + $0x38] sm:$0xf]
        %v531 = vld [vmem:[#allocation8 + $0x3c] sm:$0xf]
        %v532 = vld [vmem:[%s3] sm:$0x1]
        %v534 = vlaneseq
        %v535 = vshrl.u32 %v534, 7
        %v536 = vsub.s32 0, %v535
        %v537 = vrot.slane %v532, %v536
        %v555 = vunpack.c.l.b16 %v516
        %v556 = vunpack.c.l.b16 %v517
        %v557 = vunpack.c.l.b16 %v518
        %v558 = vunpack.c.l.b16 %v519
        %v559 = vunpack.c.l.b16 %v520
        %v560 = vunpack.c.l.b16 %v521
        %v561 = vunpack.c.l.b16 %v522
        %v562 = vunpack.c.l.b16 %v523
        %v563 = vunpack.c.l.b16 %v524
        %v564 = vunpack.c.l.b16 %v525
        %v565 = vunpack.c.l.b16 %v526
        %v566 = vunpack.c.l.b16 %v527
        %v567 = vunpack.c.l.b16 %v528
        %v568 = vunpack.c.l.b16 %v529
        %v569 = vunpack.c.l.b16 %v530
        %v570 = vunpack.c.l.b16 %v531
        %v571 = vpack.c.b16 %v556, %v555
        %v572 = vpack.c.b16 %v558, %v557
        %v573 = vpack.c.b16 %v560, %v559
        %v574 = vpack.c.b16 %v562, %v561
        %v575 = vpack.c.b16 %v564, %v563
        %v576 = vpack.c.b16 %v566, %v565
        %v577 = vpack.c.b16 %v568, %v567
        %v578 = vpack.c.b16 %v570, %v569
        %587 = vmatprep.subr.bf16.mxu0 0
        %588 = vmatpush1.bf16.msra.mxu0 %v571
        %589 = vmatprep.subr.bf16.mxu0 0
        %590 = vmatpush1.bf16.msra.mxu0 %v572
        %591 = vmatprep.subr.bf16.mxu0 0
        %592 = vmatpush1.bf16.msra.mxu0 %v573
        %593 = vmatprep.subr.bf16.mxu0 0
        %594 = vmatpush1.bf16.msra.mxu0 %v574
        %595 = vmatprep.subr.bf16.mxu0 0
        %596 = vmatpush1.bf16.msra.mxu0 %v575
        %597 = vmatprep.subr.bf16.mxu0 0
        %598 = vmatpush1.bf16.msra.mxu0 %v576
        %599 = vmatprep.subr.bf16.mxu0 0
        %600 = vmatpush1.bf16.msra.mxu0 %v577
        %601 = vmatprep.subr.bf16.mxu0 0
        %602 = vmatpush1.bf16.msra.mxu0 %v578
        %603 = vmatprep.subr.bf16.mxu0 0
        %604 = vmatpush1.bf16.msra.mxu0 0
        %605 = vmatprep.subr.bf16.mxu0 0
        %606 = vmatpush1.bf16.msra.mxu0 0
        %607 = vmatprep.subr.bf16.mxu0 0
        %608 = vmatpush1.bf16.msra.mxu0 0
        %609 = vmatprep.subr.bf16.mxu0 0
        %610 = vmatpush1.bf16.msra.mxu0 0
        %611 = vmatprep.subr.bf16.mxu0 0
        %612 = vmatpush1.bf16.msra.mxu0 0
        %613 = vmatprep.subr.bf16.mxu0 0
        %614 = vmatpush1.bf16.msra.mxu0 0
        %615 = vmatprep.subr.bf16.mxu0 0
        %616 = vmatpush1.bf16.msra.mxu0 0
        %617 = vmatprep.subr.bf16.mxu0 0
        %618 = vmatpush1.bf16.msra.mxu0 0
        %619 = vmatprep.mubr.bf16.mxu0 0
        %620 = vmatmul.mubr.bf16.gmra.mrb[0].mxu0 %v515
        %v621 = vpop.f32.mrb[0].mxu0
        %v622 = vadd.f32 %v537, %v621
        %v623 = vpop.f32.mrb[0].mxu0
        %v624 = vpop.f32.mrb[0].mxu0
        %v625 = vpop.f32.mrb[0].mxu0
        %626 = vdwg.mxu0
        %v627 = vld [vmem:[#allocation2] sm:$0xf]
        %v628 = vld [vmem:[#allocation2 + $0x4] sm:$0xf]
        %v629 = vpack.c.bf16 %v622, %v622
        %630 = vmatprep.subr.bf16.mxu0 0
        %631 = vmatpush1.bf16.xpose.msra.mxu0 %v627
        %632 = vmatprep.subr.bf16.mxu0 0
        %633 = vmatpush1.bf16.xpose.msra.mxu0 0
        %634 = vmatprep.subr.bf16.mxu0 0
        %635 = vmatpush1.bf16.xpose.msra.mxu0 0
        %636 = vmatprep.subr.bf16.mxu0 0
        %637 = vmatpush1.bf16.xpose.msra.mxu0 0
        %638 = vmatprep.subr.bf16.mxu0 0
        %639 = vmatpush1.bf16.xpose.msra.mxu0 0
        %640 = vmatprep.subr.bf16.mxu0 0
        %641 = vmatpush1.bf16.xpose.msra.mxu0 0
        %642 = vmatprep.subr.bf16.mxu0 0
        %643 = vmatpush1.bf16.xpose.msra.mxu0 0
        %644 = vmatprep.subr.bf16.mxu0 0
        %645 = vmatpush1.bf16.xpose.msra.mxu0 0
        %646 = vmatprep.subr.bf16.mxu0 0
        %647 = vmatpush1.bf16.xpose.msra.mxu0 0
        %648 = vmatprep.subr.bf16.mxu0 0
        %649 = vmatpush1.bf16.xpose.msra.mxu0 0
        %650 = vmatprep.subr.bf16.mxu0 0
        %651 = vmatpush1.bf16.xpose.msra.mxu0 0
        %652 = vmatprep.subr.bf16.mxu0 0
        %653 = vmatpush1.bf16.xpose.msra.mxu0 0
        %654 = vmatprep.subr.bf16.mxu0 0
        %655 = vmatpush1.bf16.xpose.msra.mxu0 0
        %656 = vmatprep.subr.bf16.mxu0 0
        %657 = vmatpush1.bf16.xpose.msra.mxu0 0
        %658 = vmatprep.subr.bf16.mxu0 0
        %659 = vmatpush1.bf16.xpose.msra.mxu0 0
        %660 = vmatprep.subr.bf16.mxu0 0
        %661 = vmatpush1.bf16.xpose.msra.mxu0 0
        %662 = vmatprep.mubr.bf16.mxu0 0
        %663 = vmatmul.mubr.bf16.gmra.mrb[0].mxu0 %v629
        %v664 = vpop.f32.mrb[0].mxu0
        %v665 = vadd.f32 0.0, %v664
        %v666 = vpop.f32.mrb[0].mxu0
        %v667 = vpop.f32.mrb[0].mxu0
        %v668 = vpop.f32.mrb[0].mxu0
        %669 = vdwg.mxu0
        %vm670 = vcmask 64512
        %v671 = vsel %vm670, %v665, -inf
        %672 = vmax.xlane.f32.xlu0 %v671
        %v673 = vpop.xlane.xlu0 %672
        %v674 = vsub.f32 %v665, %v673
        %v675 = vmul.f32 %v674, 1.442695
        %v676 = vpow.pop %v675
        %v677 = vsel %vm670, %v676, 0.0
        %678 = vadd.xlane.f32.xlu0 %v677
        %v679 = vpop.xlane.xlu0 %678
        %v680 = vpack.c.bf16 %v676, %v676
        %v682 = vsel %vm670, %v680, 0
        %vm684 = vcmask 1043456
        %v686 = vsel %vm684, %v628, 0
        %688 = vmatprep.subr.bf16.mxu0 0
        %689 = vmatpush1.bf16.msra.mxu0 %v686
        %690 = vmatprep.subr.bf16.mxu0 0
        %691 = vmatpush1.bf16.msra.mxu0 0
        %692 = vmatprep.subr.bf16.mxu0 0
        %693 = vmatpush1.bf16.msra.mxu0 0
        %694 = vmatprep.subr.bf16.mxu0 0
        %695 = vmatpush1.bf16.msra.mxu0 0
        %696 = vmatprep.subr.bf16.mxu0 0
        %697 = vmatpush1.bf16.msra.mxu0 0
        %698 = vmatprep.subr.bf16.mxu0 0
        %699 = vmatpush1.bf16.msra.mxu0 0
        %700 = vmatprep.subr.bf16.mxu0 0
        %701 = vmatpush1.bf16.msra.mxu0 0
        %702 = vmatprep.subr.bf16.mxu0 0
        %703 = vmatpush1.bf16.msra.mxu0 0
        %704 = vmatprep.subr.bf16.mxu0 0
        %705 = vmatpush1.bf16.msra.mxu0 0
        %706 = vmatprep.subr.bf16.mxu0 0
        %707 = vmatpush1.bf16.msra.mxu0 0
        %708 = vmatprep.subr.bf16.mxu0 0
        %709 = vmatpush1.bf16.msra.mxu0 0
        %710 = vmatprep.subr.bf16.mxu0 0
        %711 = vmatpush1.bf16.msra.mxu0 0
        %712 = vmatprep.subr.bf16.mxu0 0
        %713 = vmatpush1.bf16.msra.mxu0 0
        %714 = vmatprep.subr.bf16.mxu0 0
        %715 = vmatpush1.bf16.msra.mxu0 0
        %716 = vmatprep.subr.bf16.mxu0 0
        %717 = vmatpush1.bf16.msra.mxu0 0
        %718 = vmatprep.subr.bf16.mxu0 0
        %719 = vmatpush1.bf16.msra.mxu0 0
        %720 = vmatprep.mubr.bf16.mxu0 0
        %721 = vmatmul.mubr.bf16.gmra.mrb[0].mxu0 %v682
        %v722 = vpop.f32.mrb[0].mxu0
        %v723 = vadd.f32 0.0, %v722
        %v724 = vpop.f32.mrb[0].mxu0
        %v725 = vpop.f32.mrb[0].mxu0
        %v726 = vpop.f32.mrb[0].mxu0
        %727 = vdwg.mxu0
        %v728 = vrcp.pop %v679
        %v729 = vmul.f32 %v723, %v728
        %v730 = vadd.f32 %v514, %v729
        %731 = vst [vmem:[%s349] sm:$0xff] %v730
        %s732 = sand.u32 %s187, 1
        %s733 = scalar_lea.sflag [#allocation5], %s732
        %s734 = sand.u32 %s187, 1
        %s735 = smul.addr %s734, 8
        %s736 = scalar_lea.vmem [#allocation11], %s735
        // Predicated region
        $region65: #{tpu_custom_call.1} parent=43 // pred_check
          %p737 = pneg %p197
        $region66: #{tpu_custom_call.1} parent=43 // pred_check_branch
          %739 = sbr.rel (%p737) target = $region68
        $region67: #{tpu_custom_call.1} parent=43 // pred_region
          %s741 = ssub.s32 128, 128
          %742 = vsyncadd %s733, %s741
          %s743 = sadd.s32 %s32, %s31
          %s744 = smul.addr %s743, 128
          %s745 = scalar_lea.hbm %s6, %s744
          %s747 = sshll.u32 %s736, 4
          %s748 = int_to_ptr.vmem [resolvable:$true] %s747
          %750 = dma.vmem_to_hbm [thread:$0]  %s748, 128, %s745, %s733
        $region68: #{tpu_custom_call.1} parent=43 // pred_fallthru
          _
      $region44: #{tpu_custom_call.1} parent=5 // pred_fallthru
        _
      %p751 = scmp.le.s32.totalorder 2, %s22
      // Predicated region
      $region69: #{tpu_custom_call.1} parent=5 // pred_check
        %p752 = pneg %p751
      $region70: #{tpu_custom_call.1} parent=5 // pred_check_branch
        %754 = sbr.rel (%p752) target = $region72
      $region71: #{tpu_custom_call.1} parent=5 // pred_region
        %s755 = ssub.s32 %s22, 2
        // Predicated region
        $region73: #{tpu_custom_call.1} parent=71 // pred_check
          %p756 = pneg %p203
        $region74: #{tpu_custom_call.1} parent=71 // pred_check_branch
          %758 = sbr.rel (%p756) target = $region76
        $region75: #{tpu_custom_call.1} parent=71 // pred_region
          %s759 = sand.u32 %s188, 1
          %s760 = scalar_lea.sflag [#allocation5], %s759
          %s761 = sand.u32 %s188, 1
          %s762 = smul.addr %s761, 8
          %s763 = scalar_lea.vmem [#allocation11], %s762
          %764 = dma.done %s760, 128
        $region76: #{tpu_custom_call.1} parent=71 // pred_fallthru
          _
      $region72: #{tpu_custom_call.1} parent=5 // pred_fallthru
        _
    $region6: #{tpu_custom_call.1} parent=1 // loop_footer
      %s26 = sadd.s32 1, %s22
    $region7: #{tpu_custom_call.1} parent=1 // loop_footer_branch
      %21 = sbr.rel target = $region3
    $region8: #{tpu_custom_call.1} parent=1 // loop_exit
      _
    %765 = vsyncpa [#allocation4], 1
    %s766 = scalar_lea.sflag [#allocation4], 1
    %767 = vsyncpa %s766, 1
    %768 = vsyncpa [#allocation7], 1
    %s769 = scalar_lea.sflag [#allocation7], 1
    %770 = vsyncpa %s769, 1
    %771 = vsyncpa [#allocation10], 1
    %772 = vsyncpa [#allocation5], 1
    %s773 = scalar_lea.sflag [#allocation5], 1
    %774 = vsyncpa %s773, 1

</llo_original>
